<compile_context>
chip_gen: v5e
topology: v5e:2x2
jax: 0.10.0
libtpu: 0.0.40
codegen_flags: <defaults>
</compile_context>

<pallas_src>
import math

import jax
import jax.numpy as jnp
from jax.experimental import pallas as pl
from jax.experimental.pallas import tpu as pltpu


def _round_up(x, m):
    return ((x + m - 1) // m) * m


# ----------------------------------------------------------------------------
# Kernel: one (tm, Kpad) row tile of patches x resident (Kpad, Epad) weight
#         -> (tm, Epad) output tile (lane-dense, unmasked stores).
# ----------------------------------------------------------------------------
def _patch_embed_kernel(xp_ref, w_ref, b_ref, out_ref):
    acc = jnp.dot(xp_ref[...], w_ref[...],
                  preferred_element_type=jnp.float32)          # (tm, Epad) f32
    out_ref[...] = (acc + b_ref[...]).astype(out_ref.dtype)


# ----------------------------------------------------------------------------
# VMEM-budget-aware row-tile selection.
# ----------------------------------------------------------------------------
_VMEM_TILE_BUDGET = 40 * 1024 * 1024   # buffer budget; safe under v7x's 64 MiB
_VMEM_LIMIT_BYTES = 48 * 1024 * 1024   # scoped-VMEM limit passed to Mosaic


def _tile_bytes(tm, kpad, epad):
    # double-buffered input + output row tiles, double-buffered (constant)
    # weight block, bias padded to 8 sublanes.  All f32.
    return 4 * (2 * tm * kpad + 2 * tm * epad + 2 * kpad * epad + 8 * epad)


def _pick_row_tile(M, kpad, epad):
    m8 = _round_up(M, 8)
    # Tiny / moderate problem: a single block beats splitting (grid is a
    # sequential loop; splitting only adds ~0.35us/step and, on v7x, makes
    # each core re-DMA the resident weight for no gain).
    if m8 <= 2048 and _tile_bytes(m8, kpad, epad) <= _VMEM_TILE_BUDGET:
        return m8
    # Large M: biggest tile that fits the budget (mem-bound kernel; roofline
    # fraction rises sharply with tile size).
    for tm in (2048, 1024, 512, 256, 128, 64, 32, 16, 8):
        if _tile_bytes(tm, kpad, epad) <= _VMEM_TILE_BUDGET:
            return tm
    return 8


# ----------------------------------------------------------------------------
# Wrapper: patch extraction + zero-padding (pure layout, plain JAX) + Pallas
# tiled matmul, then slice back to the true (M, E) result.
# ----------------------------------------------------------------------------
def patch_embed_forward(x, weight, bias, patch_size=1):
    """x: (B, H, W) float; weight: (E, C, K) Conv1d weight; bias: (E,)."""
    B, H, W = x.shape
    E, C, K = weight.shape
    assert W == C, f"in_chans mismatch: x has {W}, weight has {C}"
    assert K == patch_size, "Conv1d kernel_size must equal patch_size"

    T = H // patch_size                     # output sequence length
    M = B * T
    Kdim = patch_size * C

    Kpad = _round_up(Kdim, 128)             # aligned contraction (lane-dense)
    Epad = _round_up(E, 128)                # lane-dense output slab

    # patches[b, t, k, c] = x[b, t*patch + k, c] -> (M, Kdim)
    xp = x[:, :T * patch_size, :].reshape(B, T, patch_size, C)
    xp = xp.reshape(M, Kdim).astype(jnp.float32)

    # flattened weight: wf[(k, c), e] = weight[e, c, k], zero-padded
    wf = jnp.transpose(weight, (2, 1, 0)).reshape(Kdim, E).astype(jnp.float32)
    wf = jnp.pad(wf, ((0, Kpad - Kdim), (0, Epad - E)))
    bf = jnp.pad(bias.astype(jnp.float32).reshape(1, E), ((0, 0), (0, Epad - E)))

    tm = _pick_row_tile(M, Kpad, Epad)
    Mpad = _round_up(M, tm)
    xp = jnp.pad(xp, ((0, Mpad - M), (0, Kpad - Kdim)))

    grid = (Mpad // tm,)

    out = pl.pallas_call(
        _patch_embed_kernel,
        out_shape=jax.ShapeDtypeStruct((Mpad, Epad), jnp.float32),
        grid=grid,
        in_specs=[
            pl.BlockSpec((tm, Kpad), lambda i: (i, 0)),    # row tile of patches
            pl.BlockSpec((Kpad, Epad), lambda i: (0, 0)),  # weight, resident
            pl.BlockSpec((1, Epad), lambda i: (0, 0)),     # bias, resident
        ],
        out_specs=pl.BlockSpec((tm, Epad), lambda i: (i, 0)),
        compiler_params=pltpu.CompilerParams(
            dimension_semantics=("parallel",),   # megacore sharding on v7x
            vmem_limit_bytes=_VMEM_LIMIT_BYTES,  # tiles budgeted <= 40 MiB
        ),
    )(xp, wf, bf)

    # Slice padded rows / embedding columns back to the true result.
    return out[:M, :E].reshape(B, T, E)


# ----------------------------------------------------------------------------
# Deterministic parameter init (PyTorch Conv1d defaults: U(-1/sqrt(fan_in), .))
# ----------------------------------------------------------------------------
def init_params(key, in_chans, embed_dim, patch_size):
    kw, kb = jax.random.split(key)
    fan_in = in_chans * patch_size
    bound = 1.0 / math.sqrt(fan_in)
    weight = jax.random.uniform(kw, (embed_dim, in_chans, patch_size),
                                minval=-bound, maxval=bound, dtype=jnp.float32)
    bias = jax.random.uniform(kb, (embed_dim,),
                              minval=-bound, maxval=bound, dtype=jnp.float32)
    return weight, bias


# ----------------------------------------------------------------------------
# Plain-JAX reference (same math, no Pallas) for correctness checking
# ----------------------------------------------------------------------------
def patch_embed_reference(x, weight, bias, patch_size=1):
    B, H, W = x.shape
    E, C, K = weight.shape
    T = H // patch_size
    xp = x[:, :T * patch_size, :].reshape(B, T, patch_size, C)
    out = jnp.einsum('btkc,eck->bte', xp, weight,
                     preferred_element_type=jnp.float32)
    return out + bias.reshape(1, 1, E)


if __name__ == "__main__":
    key = jax.random.PRNGKey(0)
    k1x, k1p, k2x, k2p = jax.random.split(key, 4)

    # --- case 1: module defaults (patch_size=1, in_chans=116, embed_dim=90) ---
    B, H, C, E, P = 2, 8, 116, 90, 1
    x1 = jax.random.normal(k1x, (B, H, C), dtype=jnp.float32)
    w1, b1 = init_params(k1p, C, E, P)

    y1 = patch_embed_forward(x1, w1, b1, patch_size=P)
    jax.block_until_ready(y1)
    assert y1.shape == (B, H // P, E)
    r1 = patch_embed_reference(x1, w1, b1, patch_size=P)
    assert jnp.allclose(y1, r1, rtol=1e-5, atol=1e-5), "case 1 mismatch"

    # --- case 2: non-trivial patch size ---
    B2, H2, C2, E2, P2 = 2, 16, 8, 32, 2
    x2 = jax.random.normal(k2x, (B2, H2, C2), dtype=jnp.float32)
    w2, b2 = init_params(k2p, C2, E2, P2)

    y2 = patch_embed_forward(x2, w2, b2, patch_size=P2)
    jax.block_until_ready(y2)
    assert y2.shape == (B2, H2 // P2, E2)
    r2 = patch_embed_reference(x2, w2, b2, patch_size=P2)
    assert jnp.allclose(y2, r2, rtol=1e-5, atol=1e-5), "case 2 mismatch"

    print("KERNEL_OK")
</pallas_src>

<mosaic_0001>
module attributes {stable_mosaic.version = 11 : i64} {
  func.func @_patch_embed_kernel(%arg0: i32, %arg1: memref<16x128xf32, #tpu.memory_space<vmem>>, %arg2: memref<128x128xf32, #tpu.memory_space<vmem>>, %arg3: memref<1x128xf32, #tpu.memory_space<vmem>>, %arg4: memref<16x128xf32, #tpu.memory_space<vmem>>) attributes {dimension_semantics = [#tpu.dimension_semantics<parallel>], iteration_bounds = array<i64: 1>, scalar_prefetch = 0 : i64, scratch_operands = 0 : i64, tpu.core_type = #tpu.core_type<tc>, window_params = [{transform_indices = @transform_0, window_bounds = array<i64: 16, 128>}, {pipeline_mode = #tpu.pipeline_mode<synchronous>, transform_indices = @transform_1, window_bounds = array<i64: 128, 128>}, {pipeline_mode = #tpu.pipeline_mode<synchronous>, transform_indices = @transform_2, window_bounds = array<i64: 1, 128>}, {transform_indices = @transform_3, window_bounds = array<i64: 16, 128>}]} {
    %c0 = arith.constant 0 : index
    %c0_0 = arith.constant 0 : index
    %0 = vector.load %arg1[%c0, %c0_0] : memref<16x128xf32, #tpu.memory_space<vmem>>, vector<16x128xf32>
    %c0_1 = arith.constant 0 : index
    %c0_2 = arith.constant 0 : index
    %1 = vector.load %arg2[%c0_1, %c0_2] : memref<128x128xf32, #tpu.memory_space<vmem>>, vector<128x128xf32>
    %cst = arith.constant dense<0.000000e+00> : vector<16x128xf32>
    %2 = tpu.matmul %0, %1, %cst {dimension_numbers = #tpu.dot_dimension_numbers<[1], [0], [0], [1], [0, 0, 1, 1], [], []>} : vector<16x128xf32>, vector<128x128xf32>, vector<16x128xf32> -> vector<16x128xf32>
    %c0_3 = arith.constant 0 : index
    %c0_4 = arith.constant 0 : index
    %3 = vector.load %arg3[%c0_3, %c0_4] : memref<1x128xf32, #tpu.memory_space<vmem>>, vector<1x128xf32>
    %4 = vector.broadcast %3 : vector<1x128xf32> to vector<16x128xf32>
    %5 = arith.addf %2, %4 : vector<16x128xf32>
    %c0_5 = arith.constant 0 : index
    %c0_6 = arith.constant 0 : index
    %6 = vector.load %arg4[%c0_5, %c0_6] : memref<16x128xf32, #tpu.memory_space<vmem>>, vector<16x128xf32>
    tpu.vector_store %arg4[%c0_5, %c0_6], %5 {strides = array<i32>} : memref<16x128xf32, #tpu.memory_space<vmem>>, vector<16x128xf32>,
    return
  }
  func.func @transform_0(%arg0: i32) -> (i32, i32) {
    %c0_i32 = arith.constant 0 : i32
    %c0_i32_0 = arith.constant 0 : i32
    return %arg0, %c0_i32 : i32, i32
  }
  func.func @transform_1(%arg0: i32) -> (i32, i32) {
    %c0_i32 = arith.constant 0 : i32
    %c0_i32_0 = arith.constant 0 : i32
    %c0_i32_1 = arith.constant 0 : i32
    return %c0_i32, %c0_i32_0 : i32, i32
  }
  func.func @transform_2(%arg0: i32) -> (i32, i32) {
    %c0_i32 = arith.constant 0 : i32
    %c0_i32_0 = arith.constant 0 : i32
    %c0_i32_1 = arith.constant 0 : i32
    return %c0_i32, %c0_i32_0 : i32, i32
  }
  func.func @transform_3(%arg0: i32) -> (i32, i32) {
    %c0_i32 = arith.constant 0 : i32
    %c0_i32_0 = arith.constant 0 : i32
    return %arg0, %c0_i32 : i32, i32
  }
}

</mosaic_0001>

<llo_original>
// kernel: tpu_custom_call.1
$region0: #{tpu_custom_call.1}
  #allocation0 [shape = 'u32[]', space=smem, size = 0x4, offset = 0x4, fixed_abs, tag = 'smem constant byte address 0x4 - core index']
  #allocation1 [shape = 'u32[72,128]{1,0:T(1,128)}', space=vmem, size = 0x9000, scoped, tag = 'internal scratch']
  %s0 = inlined_call_operand.hbm [shape: f32[16,128], index: 0, kind: input, shape index: {}]
  %s1 = inlined_call_operand.hbm [shape: f32[128,128], index: 1, kind: input, shape index: {}]
  %s2 = inlined_call_operand.vmem [shape: f32[1,128], index: 2, kind: input, shape index: {}]
  %s3 = inlined_call_operand.hbm [shape: f32[16,128], index: 3, kind: output, shape index: {}]
  %s4 = sld [smem:[#allocation0]]
  $region30: #{tpu_custom_call.1} parent=0
    _
  %s6 = ssub.s32 1, %s4
  %s7 = scalar_select 0, %s6, %s4
  $region1: #{tpu_custom_call.1} parent=0
    #allocation2 [shape = 'u8[8192]{0}', space=vmem, size = 0x2000, scoped, tag = 'input window, operand 0, single buffered']
    #allocation3 [shape = 's32[1]{0}', space=sflag, size = 0x4, scoped, tag = 'scoped memory for tpu_custom_call.1']
    #allocation4 [shape = 's32[1]{0}', space=sflag, size = 0x4, scoped, tag = 'scoped memory for tpu_custom_call.1']
    #allocation5 [shape = 'u8[65536]{0}', space=vmem, size = 0x10000, scoped, tag = 'input window, operand 1, single buffered']
    #allocation6 [shape = 's32[1]{0}', space=sflag, size = 0x4, scoped, tag = 'scoped memory for tpu_custom_call.1']
    #allocation7 [shape = 'u8[8192]{0}', space=vmem, size = 0x2000, scoped, tag = 'output window, operand 0, single buffered']
    %8 = vsyncpa [#allocation3], 0
    %9 = vsyncpa [#allocation6], 0
    %10 = vsyncpa [#allocation4], 0
    // Predicated region
    $region2: #{tpu_custom_call.1} parent=1 // pred_check
      _
    $region3: #{tpu_custom_call.1} parent=1 // pred_check_branch
      %12 = sbr.rel (0) target = $region5
    $region4: #{tpu_custom_call.1} parent=1 // pred_region
      %14 = vsyncadd [#allocation3], 0
      %s15 = sshll.u32 %s0, 4
      %s16 = int_to_ptr.hbm [resolvable:$true] %s15
      %s17 = sshll.u32 [#allocation2], 4
      %s18 = int_to_ptr.vmem [resolvable:$true] %s17
      %23 = dma.hbm_to_vmem [thread:$0]  %s16, 256, %s18, [#allocation3], 128, 128, 8
    $region5: #{tpu_custom_call.1} parent=1 // pred_fallthru
      _
    // Predicated region
    $region6: #{tpu_custom_call.1} parent=1 // pred_check
      _
    $region7: #{tpu_custom_call.1} parent=1 // pred_check_branch
      %25 = sbr.rel (0) target = $region9
    $region8: #{tpu_custom_call.1} parent=1 // pred_region
      %27 = vsyncadd [#allocation6], 0
      %s28 = sshll.u32 %s1, 4
      %s29 = int_to_ptr.hbm [resolvable:$true] %s28
      %s30 = sshll.u32 [#allocation5], 4
      %s31 = int_to_ptr.vmem [resolvable:$true] %s30
      %36 = dma.hbm_to_vmem [thread:$0]  %s29, 2048, %s31, [#allocation6], 128, 128, 8
    $region9: #{tpu_custom_call.1} parent=1 // pred_fallthru
      _
    // Predicated region
    $region10: #{tpu_custom_call.1} parent=1 // pred_check
      _
    $region11: #{tpu_custom_call.1} parent=1 // pred_check_branch
      %38 = sbr.rel (0) target = $region13
    $region12: #{tpu_custom_call.1} parent=1 // pred_region
      _
    $region13: #{tpu_custom_call.1} parent=1 // pred_fallthru
      _
    // Predicated region
    $region14: #{tpu_custom_call.1} parent=1 // pred_check
      _
    $region15: #{tpu_custom_call.1} parent=1 // pred_check_branch
      %40 = sbr.rel (0) target = $region17
    $region16: #{tpu_custom_call.1} parent=1 // pred_region
      %42 = dma.done [#allocation3], 256
    $region17: #{tpu_custom_call.1} parent=1 // pred_fallthru
      _
    // Predicated region
    $region18: #{tpu_custom_call.1} parent=1 // pred_check
      _
    $region19: #{tpu_custom_call.1} parent=1 // pred_check_branch
      %44 = sbr.rel (0) target = $region21
    $region20: #{tpu_custom_call.1} parent=1 // pred_region
      %46 = dma.done [#allocation6], 2048
    $region21: #{tpu_custom_call.1} parent=1 // pred_fallthru
      _
    %v47 = vld [vmem:[#allocation2] sm:$0xff]
    %v48 = vld [vmem:[#allocation2 + $0x8] sm:$0xff]
    %v49 = vld [vmem:[#allocation5] sm:$0xff]
    %v50 = vld [vmem:[#allocation5 + $0x8] sm:$0xff]
    %v51 = vld [vmem:[#allocation5 + $0x10] sm:$0xff]
    %v52 = vld [vmem:[#allocation5 + $0x18] sm:$0xff]
    %v53 = vld [vmem:[#allocation5 + $0x20] sm:$0xff]
    %v54 = vld [vmem:[#allocation5 + $0x28] sm:$0xff]
    %v55 = vld [vmem:[#allocation5 + $0x30] sm:$0xff]
    %v56 = vld [vmem:[#allocation5 + $0x38] sm:$0xff]
    %v57 = vld [vmem:[#allocation5 + $0x40] sm:$0xff]
    %v58 = vld [vmem:[#allocation5 + $0x48] sm:$0xff]
    %v59 = vld [vmem:[#allocation5 + $0x50] sm:$0xff]
    %v60 = vld [vmem:[#allocation5 + $0x58] sm:$0xff]
    %v61 = vld [vmem:[#allocation5 + $0x60] sm:$0xff]
    %v62 = vld [vmem:[#allocation5 + $0x68] sm:$0xff]
    %v63 = vld [vmem:[#allocation5 + $0x70] sm:$0xff]
    %v64 = vld [vmem:[#allocation5 + $0x78] sm:$0xff]
    %v65 = vld [vmem:[%s2] sm:$0x1]
    %v67 = vperm.slane %v65, 0
    %69 = vmatpush.msra.mxu0 %v64
    %70 = vmatpush.msra.mxu0 %v63
    %71 = vmatpush.msra.mxu0 %v62
    %72 = vmatpush.msra.mxu0 %v61
    %73 = vmatpush.msra.mxu0 %v60
    %74 = vmatpush.msra.mxu0 %v59
    %75 = vmatpush.msra.mxu0 %v58
    %76 = vmatpush.msra.mxu0 %v57
    %77 = vmatpush.msra.mxu0 %v56
    %78 = vmatpush.msra.mxu0 %v55
    %79 = vmatpush.msra.mxu0 %v54
    %80 = vmatpush.msra.mxu0 %v53
    %81 = vmatpush.msra.mxu0 %v52
    %82 = vmatpush.msra.mxu0 %v51
    %83 = vmatpush.msra.mxu0 %v50
    %84 = vmatpush.msra.mxu0 %v49
    %85 = vmatmul.f32.gmra.mxu0 %v47
    %v86 = vpop.f32.mrf.mxu0
    %v87 = vadd.f32 %v67, %v86
    %88 = vmatmul.f32.gmra.mxu0 %v48
    %v89 = vpop.f32.mrf.mxu0
    %v90 = vadd.f32 %v67, %v89
    %91 = vdwg.mxu0
    %92 = vst [vmem:[#allocation7] sm:$0xff] %v87
    %93 = vst [vmem:[#allocation7 + $0x8] sm:$0xff] %v90
    // Predicated region
    $region22: #{tpu_custom_call.1} parent=1 // pred_check
      _
    $region23: #{tpu_custom_call.1} parent=1 // pred_check_branch
      %95 = sbr.rel (0) target = $region25
    $region24: #{tpu_custom_call.1} parent=1 // pred_region
      %97 = vsyncadd [#allocation4], 0
      %s98 = sshll.u32 [#allocation7], 4
      %s99 = int_to_ptr.vmem [resolvable:$true] %s98
      %s100 = sshll.u32 %s3, 4
      %s101 = int_to_ptr.hbm [resolvable:$true] %s100
      %106 = dma.vmem_to_hbm [thread:$0]  %s99, 256, %s101, [#allocation4], 128, 128, 8
    $region25: #{tpu_custom_call.1} parent=1 // pred_fallthru
      _
    // Predicated region
    $region26: #{tpu_custom_call.1} parent=1 // pred_check
      _
    $region27: #{tpu_custom_call.1} parent=1 // pred_check_branch
      %108 = sbr.rel (0) target = $region29
    $region28: #{tpu_custom_call.1} parent=1 // pred_region
      %110 = dma.done [#allocation4], 256
    $region29: #{tpu_custom_call.1} parent=1 // pred_fallthru
      _
    %111 = vsyncpa [#allocation3], 1
    %112 = vsyncpa [#allocation6], 1
    %113 = vsyncpa [#allocation4], 1

</llo_original>
